<compile_context>
chip_gen: v7x
topology: tpu7x:2x2x1
jax: 0.10.0
libtpu: 0.0.40
codegen_flags: <defaults>
</compile_context>

<pallas_src>
import jax
import jax.numpy as jnp
from jax.experimental import pallas as pl
from jax.experimental.pallas import tpu as pltpu


def deconv_layer_kernel(up_ref, xh_ref, w_ref, bu_ref, bc_ref, o_ref):
    # up_ref: [C, T]    bf16  up-branch linear term (deconv * BN scale), natural layout
    # xh_ref: [Cin, T]  f32   high-res input tile, natural layout (flattened 2H*2W)
    # w_ref : [C, Cin]  bf16  BN-folded 1x1 conv weight
    # bu_ref: [C, 1]    f32   folded BN bias (up branch)
    # bc_ref: [C, 1]    f32   folded BN bias (conv branch)
    # o_ref : [C, T]    bf16  output tile
    up = jnp.maximum(up_ref[...].astype(jnp.float32) + bu_ref[...], 0.0)     # VPU, f32
    y = jnp.dot(w_ref[...], xh_ref[...].astype(jnp.bfloat16),
                preferred_element_type=jnp.float32)                          # MXU, f32 acc
    conv = jnp.maximum(y + bc_ref[...], 0.0)
    o_ref[...] = (up + conv).astype(o_ref.dtype)


def _pick_tile(hw2, cap):
    """Lane tile: multiple of 128, <= cap; prefer exact divisors of hw2 near cap."""
    cap = max(128, (cap // 128) * 128)
    if hw2 <= cap:
        return hw2                        # single full-extent tile (always legal)
    for t in range(cap, cap // 2 - 1, -128):
        if hw2 % t == 0:
            return t                      # exact divisor -> no partial last tile
    return cap                            # cdiv grid; Pallas clamps the final tile


def init_params(key, out_dim, channel):
    ks = jax.random.split(key, 10)
    return dict(
        # ConvTranspose2d weight: (in_ch, out_ch/groups, kH, kW) = (C, 1, 2, 2)
        w_up=jax.random.normal(ks[0], (out_dim, 1, 2, 2), jnp.float32) * 0.5,
        # Conv2d 1x1 weight: (C_out, C_in, 1, 1)
        w_c=jax.random.normal(ks[1], (out_dim, channel, 1, 1), jnp.float32) * 0.5,
        # BatchNorm (up branch): gamma, beta, running_mean, running_var
        g_u=jax.random.uniform(ks[2], (out_dim,), jnp.float32, 0.5, 1.5),
        b_u=jax.random.normal(ks[3], (out_dim,), jnp.float32) * 0.1,
        m_u=jax.random.normal(ks[4], (out_dim,), jnp.float32) * 0.1,
        v_u=jax.random.uniform(ks[5], (out_dim,), jnp.float32, 0.5, 1.5),
        # BatchNorm (conv branch)
        g_c=jax.random.uniform(ks[6], (out_dim,), jnp.float32, 0.5, 1.5),
        b_c=jax.random.normal(ks[7], (out_dim,), jnp.float32) * 0.1,
        m_c=jax.random.normal(ks[8], (out_dim,), jnp.float32) * 0.1,
        v_c=jax.random.uniform(ks[9], (out_dim,), jnp.float32, 0.5, 1.5),
    )


def deconv_layer_forward(x_low, x_high, params, eps=1e-3, tile_hw=8192,
                         out_dtype=jnp.bfloat16):
    N, C, H, W = x_low.shape
    Nb, Cin, H2, W2 = x_high.shape
    assert Nb == N and H2 == 2 * H and W2 == 2 * W
    HW2 = H2 * W2

    # ---- fold BatchNorm (inference, eps=1e-3) into weights / per-channel biases ----
    su = params["g_u"] / jnp.sqrt(params["v_u"] + eps)
    bu = params["b_u"] - params["m_u"] * su
    sc = params["g_c"] / jnp.sqrt(params["v_c"] + eps)
    bc = params["b_c"] - params["m_c"] * sc

    # ---- up-branch linear term: depthwise ConvTranspose2d(k=2, s=2) * BN scale ----
    # One fused XLA broadcast over the SMALL low-res tensor, written in bf16, natural layout.
    wk = params["w_up"][:, 0] * su[:, None, None]                           # [C, 2, 2]
    up_lin = (x_low[:, :, :, None, :, None] * wk[None, :, None, :, None, :]
              ).reshape(N, C, H2, W2).astype(jnp.bfloat16)

    # Free (contiguous) reshapes to the flattened natural layout; no transposes, no casts.
    up_flat = up_lin.reshape(N, C, HW2)
    xh_flat = x_high.reshape(N, Cin, HW2)      # stays in its input dtype (f32 or bf16)
    w_fold = (params["w_c"][:, :, 0, 0] * sc[:, None]).astype(jnp.bfloat16)  # [C, Cin]
    bu2 = bu.reshape(C, 1).astype(jnp.float32)
    bc2 = bc.reshape(C, 1).astype(jnp.float32)

    T = _pick_tile(HW2, tile_hw)
    n_tiles = pl.cdiv(HW2, T)
    # Guarantee >= 2 grid steps so both TensorCores get work on multi-core parts (v7x).
    if N * n_tiles < 2 and T >= 256:
        T = ((T // 2) + 127) // 128 * 128
        n_tiles = pl.cdiv(HW2, T)

    xh_b = jnp.dtype(xh_flat.dtype).itemsize
    out_b = jnp.dtype(out_dtype).itemsize
    step_bytes = T * (2 * C + xh_b * Cin + out_b * C)      # per-step block footprint
    vmem_limit = int(min(64 * 1024 * 1024, max(32 * 1024 * 1024, 4 * step_bytes)))

    out_flat = pl.pallas_call(
        deconv_layer_kernel,
        out_shape=jax.ShapeDtypeStruct((N, C, HW2), out_dtype),
        grid=(N, n_tiles),
        in_specs=[
            pl.BlockSpec((None, C, T), lambda n, t: (n, 0, t)),      # up_lin tile
            pl.BlockSpec((None, Cin, T), lambda n, t: (n, 0, t)),    # x_high tile
            pl.BlockSpec((C, Cin), lambda n, t: (0, 0)),             # folded 1x1 weight
            pl.BlockSpec((C, 1), lambda n, t: (0, 0)),               # up-branch bias
            pl.BlockSpec((C, 1), lambda n, t: (0, 0)),               # conv-branch bias
        ],
        out_specs=pl.BlockSpec((None, C, T), lambda n, t: (n, 0, t)),
        compiler_params=pltpu.CompilerParams(
            dimension_semantics=("parallel", "parallel"),
            vmem_limit_bytes=vmem_limit,
        ),
    )(up_flat, xh_flat, w_fold, bu2, bc2)

    return out_flat.reshape(N, C, H2, W2)      # free reshape, no data movement


def reference_forward(x_low, x_high, params, eps=1e-3):
    """Pure-f32 JAX reference matching the PyTorch module (inference-mode BN)."""
    N, C, H, W = x_low.shape
    # up branch: depthwise ConvTranspose2d(k=2, s=2)
    wk = params["w_up"][:, 0]                                          # [C, 2, 2]
    up = (x_low[:, :, :, None, :, None] * wk[None, :, None, :, None, :]
          ).reshape(N, C, 2 * H, 2 * W)
    su = params["g_u"] / jnp.sqrt(params["v_u"] + eps)
    bu = params["b_u"] - params["m_u"] * su
    xb = jnp.maximum(up * su[None, :, None, None] + bu[None, :, None, None], 0.0)
    # conv branch: 1x1 conv + BN + ReLU
    sc = params["g_c"] / jnp.sqrt(params["v_c"] + eps)
    bc = params["b_c"] - params["m_c"] * sc
    y = jnp.einsum("co,nohw->nchw", params["w_c"][:, :, 0, 0], x_high)
    yb = jnp.maximum(y * sc[None, :, None, None] + bc[None, :, None, None], 0.0)
    return xb + yb


if __name__ == "__main__":
    N, out_dim, channel, H, W = 2, 8, 16, 32, 32
    key = jax.random.PRNGKey(0)
    k0, k1, kp = jax.random.split(key, 3)

    # layers[0]: [N, out_dim, H, W]; layers[1]: [N, channel, 2H, 2W]  (NCHW, like PyTorch)
    x_low = jax.random.normal(k0, (N, out_dim, H, W), jnp.float32)
    x_high = jax.random.normal(k1, (N, channel, 2 * H, 2 * W), jnp.float32)
    params = init_params(kp, out_dim, channel)

    # HW2 = 4096; tile_hw=1024 -> 4 spatial tiles x N=2 -> 8 pipelined grid steps.
    fwd = jax.jit(lambda xl, xh, p: deconv_layer_forward(xl, xh, p, tile_hw=1024))
    out = fwd(x_low, x_high, params)
    out = jax.block_until_ready(out)

    ref = reference_forward(x_low, x_high, params)
    assert out.shape == (N, out_dim, 2 * H, 2 * W), out.shape
    max_err = float(jnp.max(jnp.abs(out.astype(jnp.float32) - ref)))
    # bf16 output / bf16 matmul operands vs a pure-f32 reference -> bf16-level tolerance.
    assert jnp.allclose(out.astype(jnp.float32), ref, atol=1e-1, rtol=2e-2), max_err

    print("KERNEL_OK")
</pallas_src>

<mosaic_0001>
module attributes {stable_mosaic.version = 11 : i64} {
  func.func @deconv_layer_kernel(%arg0: i32, %arg1: i32, %arg2: memref<1x8x1024xbf16, #tpu.memory_space<vmem>>, %arg3: memref<1x16x1024xf32, #tpu.memory_space<vmem>>, %arg4: memref<8x16xbf16, #tpu.memory_space<vmem>>, %arg5: memref<8x1xf32, #tpu.memory_space<vmem>>, %arg6: memref<8x1xf32, #tpu.memory_space<vmem>>, %arg7: memref<1x8x1024xbf16, #tpu.memory_space<vmem>>) attributes {dimension_semantics = [#tpu.dimension_semantics<parallel>, #tpu.dimension_semantics<parallel>], iteration_bounds = array<i64: 2, 4>, scalar_prefetch = 0 : i64, scratch_operands = 0 : i64, tpu.core_type = #tpu.core_type<tc>, window_params = [{transform_indices = @transform_0, window_bounds = array<i64: 1, 8, 1024>}, {transform_indices = @transform_1, window_bounds = array<i64: 1, 16, 1024>}, {pipeline_mode = #tpu.pipeline_mode<synchronous>, transform_indices = @transform_2, window_bounds = array<i64: 8, 16>}, {pipeline_mode = #tpu.pipeline_mode<synchronous>, transform_indices = @transform_3, window_bounds = array<i64: 8, 1>}, {pipeline_mode = #tpu.pipeline_mode<synchronous>, transform_indices = @transform_4, window_bounds = array<i64: 8, 1>}, {transform_indices = @transform_5, window_bounds = array<i64: 1, 8, 1024>}]} {
    %c0 = arith.constant 0 : index
    %c0_0 = arith.constant 0 : index
    %c0_1 = arith.constant 0 : index
    %0 = vector.load %arg2[%c0, %c0_0, %c0_1] : memref<1x8x1024xbf16, #tpu.memory_space<vmem>>, vector<1x8x1024xbf16>
    %1 = vector.shape_cast %0 : vector<1x8x1024xbf16> to vector<8x1024xbf16>
    %2 = arith.extf %1 : vector<8x1024xbf16> to vector<8x1024xf32>
    %c0_2 = arith.constant 0 : index
    %c0_3 = arith.constant 0 : index
    %3 = vector.load %arg5[%c0_2, %c0_3] : memref<8x1xf32, #tpu.memory_space<vmem>>, vector<8x1xf32>
    %4 = vector.broadcast %3 : vector<8x1xf32> to vector<8x1024xf32>
    %5 = arith.addf %2, %4 : vector<8x1024xf32>
    %cst = arith.constant 0.000000e+00 : f32
    %6 = vector.broadcast %cst : f32 to vector<8x1024xf32>
    %7 = arith.maximumf %5, %6 : vector<8x1024xf32>
    %c0_4 = arith.constant 0 : index
    %c0_5 = arith.constant 0 : index
    %8 = vector.load %arg4[%c0_4, %c0_5] : memref<8x16xbf16, #tpu.memory_space<vmem>>, vector<8x16xbf16>
    %c0_6 = arith.constant 0 : index
    %c0_7 = arith.constant 0 : index
    %c0_8 = arith.constant 0 : index
    %9 = vector.load %arg3[%c0_6, %c0_7, %c0_8] : memref<1x16x1024xf32, #tpu.memory_space<vmem>>, vector<1x16x1024xf32>
    %10 = vector.shape_cast %9 : vector<1x16x1024xf32> to vector<16x1024xf32>
    %11 = arith.truncf %10 : vector<16x1024xf32> to vector<16x1024xbf16>
    %cst_9 = arith.constant dense<0.000000e+00> : vector<8x1024xf32>
    %12 = tpu.matmul %8, %11, %cst_9 {dimension_numbers = #tpu.dot_dimension_numbers<[1], [0], [0], [1], [0, 0, 1, 1], [], []>} : vector<8x16xbf16>, vector<16x1024xbf16>, vector<8x1024xf32> -> vector<8x1024xf32>
    %c0_10 = arith.constant 0 : index
    %c0_11 = arith.constant 0 : index
    %13 = vector.load %arg6[%c0_10, %c0_11] : memref<8x1xf32, #tpu.memory_space<vmem>>, vector<8x1xf32>
    %14 = vector.broadcast %13 : vector<8x1xf32> to vector<8x1024xf32>
    %15 = arith.addf %12, %14 : vector<8x1024xf32>
    %cst_12 = arith.constant 0.000000e+00 : f32
    %16 = vector.broadcast %cst_12 : f32 to vector<8x1024xf32>
    %17 = arith.maximumf %15, %16 : vector<8x1024xf32>
    %18 = arith.addf %7, %17 : vector<8x1024xf32>
    %19 = arith.truncf %18 : vector<8x1024xf32> to vector<8x1024xbf16>
    %c0_13 = arith.constant 0 : index
    %c0_14 = arith.constant 0 : index
    %c0_15 = arith.constant 0 : index
    %20 = vector.load %arg7[%c0_13, %c0_14, %c0_15] : memref<1x8x1024xbf16, #tpu.memory_space<vmem>>, vector<1x8x1024xbf16>
    %21 = vector.shape_cast %20 : vector<1x8x1024xbf16> to vector<8x1024xbf16>
    %22 = vector.shape_cast %19 : vector<8x1024xbf16> to vector<1x8x1024xbf16>
    tpu.vector_store %arg7[%c0_13, %c0_14, %c0_15], %22 {strides = array<i32>} : memref<1x8x1024xbf16, #tpu.memory_space<vmem>>, vector<1x8x1024xbf16>,
    return
  }
  func.func @transform_0(%arg0: i32, %arg1: i32) -> (i32, i32, i32) {
    %c0_i32 = arith.constant 0 : i32
    %c0_i32_0 = arith.constant 0 : i32
    return %arg0, %c0_i32, %arg1 : i32, i32, i32
  }
  func.func @transform_1(%arg0: i32, %arg1: i32) -> (i32, i32, i32) {
    %c0_i32 = arith.constant 0 : i32
    %c0_i32_0 = arith.constant 0 : i32
    return %arg0, %c0_i32, %arg1 : i32, i32, i32
  }
  func.func @transform_2(%arg0: i32, %arg1: i32) -> (i32, i32) {
    %c0_i32 = arith.constant 0 : i32
    %c0_i32_0 = arith.constant 0 : i32
    %c0_i32_1 = arith.constant 0 : i32
    return %c0_i32, %c0_i32_0 : i32, i32
  }
  func.func @transform_3(%arg0: i32, %arg1: i32) -> (i32, i32) {
    %c0_i32 = arith.constant 0 : i32
    %c0_i32_0 = arith.constant 0 : i32
    %c0_i32_1 = arith.constant 0 : i32
    return %c0_i32, %c0_i32_0 : i32, i32
  }
  func.func @transform_4(%arg0: i32, %arg1: i32) -> (i32, i32) {
    %c0_i32 = arith.constant 0 : i32
    %c0_i32_0 = arith.constant 0 : i32
    %c0_i32_1 = arith.constant 0 : i32
    return %c0_i32, %c0_i32_0 : i32, i32
  }
  func.func @transform_5(%arg0: i32, %arg1: i32) -> (i32, i32, i32) {
    %c0_i32 = arith.constant 0 : i32
    %c0_i32_0 = arith.constant 0 : i32
    return %arg0, %c0_i32, %arg1 : i32, i32, i32
  }
}

</mosaic_0001>

<llo_original>
// kernel: _lambda_.1
$region0: #{_lambda_.1}
  #allocation0 [shape = 'u32[]', space=smem, size = 0x4, offset = 0x4, fixed_abs, tag = 'smem constant byte address 0x4 - core index']
  #allocation1 [shape = 'u32[144,128]{1,0:T(1,128)}', space=vmem, size = 0x12000, scoped, tag = 'internal scratch']
  %s0 = inlined_call_operand.vmem [shape: bf16[2,8,4096], index: 0, kind: input, shape index: {}]
  %s1 = inlined_call_operand.vmem [shape: f32[2,16,4096], index: 1, kind: input, shape index: {}]
  %s2 = inlined_call_operand.vmem [shape: bf16[8,16], index: 2, kind: input, shape index: {}]
  %s3 = inlined_call_operand.vmem [shape: f32[8,1], index: 3, kind: input, shape index: {}]
  %s4 = inlined_call_operand.vmem [shape: f32[8,1], index: 4, kind: input, shape index: {}]
  %s5 = inlined_call_operand.vmem [shape: bf16[2,8,4096], index: 5, kind: output, shape index: {}]
  %s6 = sld [smem:[#allocation0]]
  $region76: #{_lambda_.1} parent=0
    _
  %s8 = ssub.s32 1, %s6
  %s9 = scalar_select 0, %s8, %s6
  $region1: #{_lambda_.1} parent=0
    #allocation2 [shape = 'u8[131072]{0}', space=vmem, size = 0x20000, scoped, tag = 'input window, operand 1']
    loop: start=0, step=1, limit=10
    $region2: #{_lambda_.1} parent=1 // loop_pre_header
      _
    $region3: #{_lambda_.1} parent=1 // loop_header
      %s11 = sphi 0, %s15
      %p12 = scmp.ge.s32.totalorder %s11, 10
      %s18 = sphi 0, %s30
      %s19 = sphi 0, %s26
      %s20 = sphi 0, %s18
      %s21 = sphi 0, %s19
      %s22 = sphi 0, %s20
      %s23 = sphi 0, %s21
      %s35 = sphi 0, %s37
      %s38 = sphi 0, %s35
      %s39 = sphi 0, %s38
      %s55 = sphi 0, %s39
      %s63 = sphi 0, %s65
      %s66 = sphi 0, %s63
      %s67 = sphi 0, %s66
      %s83 = sphi 0, %s67
      %s87 = sphi 0, %s87
      %s89 = sphi 0, %s87
      %s90 = sphi 0, %s89
      %s104 = sphi 0, %s90
      %s108 = sphi 0, %s108
      %s110 = sphi 0, %s108
      %s111 = sphi 0, %s110
      %s125 = sphi 0, %s111
      %s129 = sphi 0, %s129
      %s131 = sphi 0, %s129
      %s132 = sphi 0, %s131
      %s146 = sphi 0, %s132
      %s154 = sphi 0, %s156
      %s157 = sphi 0, %s154
      %s158 = sphi 0, %s157
      %s174 = sphi 0, %s158
    $region4: #{_lambda_.1} parent=1 // loop_header_branch
      %14 = sbr.rel (%p12) target = $region8
    $region5: #{_lambda_.1} parent=1 // loop_body
      %s16 = ssub.s32 %s11, 1
      %s17 = ssub.s32 %s11, 2
      %s24 = sadd.s32 1, %s19
      %p25 = scmp.ge.s32.totalorder %s24, 4
      %s26 = scalar_select %p25, 0, %s24
      %s27 = sadd.s32 1, %s18
      %s28 = scalar_select %p25, %s27, %s18
      %p29 = scmp.ge.s32.totalorder %s28, 2
      %s30 = scalar_select %p29, 0, %s28
      %s31 = ssub.s32 %s18, %s30
      %s32 = ssub.s32 %s19, %s26
      %s33 = sor.u32 %s31, %s32
      %p34 = scmp.eq.s32.totalorder %s33, 0
      %s36 = sadd.s32 %s35, 1
      %s37 = scalar_select %p34, %s35, %s36
      %p40 = pneg %p34
      %p41 = scmp.eq.s32.totalorder %s11, 7
      %p42 = por %p40, %p41
      %p43 = scmp.ne.s32.totalorder %s35, %s38
      %p44 = scmp.eq.s32.totalorder %s11, 0
      %p45 = por %p43, %p44
      %p46 = scmp.ne.s32.totalorder %s35, %s38
      %p47 = scmp.eq.s32.totalorder %s16, 7
      %p48 = por %p46, %p47
      %p49 = scmp.ne.s32.totalorder %s38, %s39
      %p50 = scmp.eq.s32.totalorder %s16, 0
      %p51 = por %p49, %p50
      %p52 = scmp.ne.s32.totalorder %s38, %s39
      %p53 = scmp.eq.s32.totalorder %s17, 7
      %p54 = por %p52, %p53
      %p56 = scmp.ne.s32.totalorder %s39, %s55
      %p57 = scmp.eq.s32.totalorder %s17, 0
      %p58 = por %p56, %p57
      %s59 = ssub.s32 %s18, %s30
      %s60 = ssub.s32 %s19, %s26
      %s61 = sor.u32 %s59, %s60
      %p62 = scmp.eq.s32.totalorder %s61, 0
      %s64 = sadd.s32 %s63, 1
      %s65 = scalar_select %p62, %s63, %s64
      %p68 = pneg %p62
      %p69 = scmp.eq.s32.totalorder %s11, 7
      %p70 = por %p68, %p69
      %p71 = scmp.ne.s32.totalorder %s63, %s66
      %p72 = scmp.eq.s32.totalorder %s11, 0
      %p73 = por %p71, %p72
      %p74 = scmp.ne.s32.totalorder %s63, %s66
      %p75 = scmp.eq.s32.totalorder %s16, 7
      %p76 = por %p74, %p75
      %p77 = scmp.ne.s32.totalorder %s66, %s67
      %p78 = scmp.eq.s32.totalorder %s16, 0
      %p79 = por %p77, %p78
      %p80 = scmp.ne.s32.totalorder %s66, %s67
      %p81 = scmp.eq.s32.totalorder %s17, 7
      %p82 = por %p80, %p81
      %p84 = scmp.ne.s32.totalorder %s67, %s83
      %p85 = scmp.eq.s32.totalorder %s17, 0
      %p86 = por %p84, %p85
      %s88 = sadd.s32 %s87, 1
      %p91 = scmp.eq.s32.totalorder %s11, 7
      %p92 = scmp.ne.s32.totalorder %s87, %s89
      %p93 = scmp.eq.s32.totalorder %s11, 0
      %p94 = por %p92, %p93
      %p95 = scmp.ne.s32.totalorder %s87, %s89
      %p96 = scmp.eq.s32.totalorder %s16, 7
      %p97 = por %p95, %p96
      %p98 = scmp.ne.s32.totalorder %s89, %s90
      %p99 = scmp.eq.s32.totalorder %s16, 0
      %p100 = por %p98, %p99
      %p101 = scmp.ne.s32.totalorder %s89, %s90
      %p102 = scmp.eq.s32.totalorder %s17, 7
      %p103 = por %p101, %p102
      %p105 = scmp.ne.s32.totalorder %s90, %s104
      %p106 = scmp.eq.s32.totalorder %s17, 0
      %p107 = por %p105, %p106
      %s109 = sadd.s32 %s108, 1
      %p112 = scmp.eq.s32.totalorder %s11, 7
      %p113 = scmp.ne.s32.totalorder %s108, %s110
      %p114 = scmp.eq.s32.totalorder %s11, 0
      %p115 = por %p113, %p114
      %p116 = scmp.ne.s32.totalorder %s108, %s110
      %p117 = scmp.eq.s32.totalorder %s16, 7
      %p118 = por %p116, %p117
      %p119 = scmp.ne.s32.totalorder %s110, %s111
      %p120 = scmp.eq.s32.totalorder %s16, 0
      %p121 = por %p119, %p120
      %p122 = scmp.ne.s32.totalorder %s110, %s111
      %p123 = scmp.eq.s32.totalorder %s17, 7
      %p124 = por %p122, %p123
      %p126 = scmp.ne.s32.totalorder %s111, %s125
      %p127 = scmp.eq.s32.totalorder %s17, 0
      %p128 = por %p126, %p127
      %s130 = sadd.s32 %s129, 1
      %p133 = scmp.eq.s32.totalorder %s11, 7
      %p134 = scmp.ne.s32.totalorder %s129, %s131
      %p135 = scmp.eq.s32.totalorder %s11, 0
      %p136 = por %p134, %p135
      %p137 = scmp.ne.s32.totalorder %s129, %s131
      %p138 = scmp.eq.s32.totalorder %s16, 7
      %p139 = por %p137, %p138
      %p140 = scmp.ne.s32.totalorder %s131, %s132
      %p141 = scmp.eq.s32.totalorder %s16, 0
      %p142 = por %p140, %p141
      %p143 = scmp.ne.s32.totalorder %s131, %s132
      %p144 = scmp.eq.s32.totalorder %s17, 7
      %p145 = por %p143, %p144
      %p147 = scmp.ne.s32.totalorder %s132, %s146
      %p148 = scmp.eq.s32.totalorder %s17, 0
      %p149 = por %p147, %p148
      %s150 = ssub.s32 %s18, %s30
      %s151 = ssub.s32 %s19, %s26
      %s152 = sor.u32 %s150, %s151
      %p153 = scmp.eq.s32.totalorder %s152, 0
      %s155 = sadd.s32 %s154, 1
      %s156 = scalar_select %p153, %s154, %s155
      %p159 = pneg %p153
      %p160 = scmp.eq.s32.totalorder %s11, 7
      %p161 = por %p159, %p160
      %p162 = scmp.ne.s32.totalorder %s154, %s157
      %p163 = scmp.eq.s32.totalorder %s11, 0
      %p164 = por %p162, %p163
      %p165 = scmp.ne.s32.totalorder %s154, %s157
      %p166 = scmp.eq.s32.totalorder %s16, 7
      %p167 = por %p165, %p166
      %p168 = scmp.ne.s32.totalorder %s157, %s158
      %p169 = scmp.eq.s32.totalorder %s16, 0
      %p170 = por %p168, %p169
      %p171 = scmp.ne.s32.totalorder %s157, %s158
      %p172 = scmp.eq.s32.totalorder %s17, 7
      %p173 = por %p171, %p172
      %p175 = scmp.ne.s32.totalorder %s158, %s174
      %p176 = scmp.eq.s32.totalorder %s17, 0
      %p177 = por %p175, %p176
      %p178 = scmp.le.s32.totalorder 1, %s11
      %p179 = scmp.lt.s32.totalorder %s11, 9
      %p180 = pnand %p178, %p179
      %p181 = pneg %p180
      // Predicated region
      $region9: #{_lambda_.1} parent=5 // pred_check
        _
      $region10: #{_lambda_.1} parent=5 // pred_check_branch
        %183 = sbr.rel (%p180) target = $region12
      $region11: #{_lambda_.1} parent=5 // pred_region
        %s184 = ssub.s32 %s11, 1
        // Predicated region
        $region13: #{_lambda_.1} parent=11 // pred_check
          %p185 = pneg %p100
        $region14: #{_lambda_.1} parent=11 // pred_check_branch
          %187 = sbr.rel (%p185) target = $region16
        $region15: #{_lambda_.1} parent=11 // pred_region
          _
        $region16: #{_lambda_.1} parent=11 // pred_fallthru
          _
        // Predicated region
        $region17: #{_lambda_.1} parent=11 // pred_check
          %p188 = pneg %p121
        $region18: #{_lambda_.1} parent=11 // pred_check_branch
          %190 = sbr.rel (%p188) target = $region20
        $region19: #{_lambda_.1} parent=11 // pred_region
          _
        $region20: #{_lambda_.1} parent=11 // pred_fallthru
          _
        // Predicated region
        $region21: #{_lambda_.1} parent=11 // pred_check
          %p191 = pneg %p142
        $region22: #{_lambda_.1} parent=11 // pred_check_branch
          %193 = sbr.rel (%p191) target = $region24
        $region23: #{_lambda_.1} parent=11 // pred_region
          _
        $region24: #{_lambda_.1} parent=11 // pred_fallthru
          _
      $region12: #{_lambda_.1} parent=5 // pred_fallthru
        _
      %p194 = scmp.lt.s32.totalorder %s11, 8
      // Predicated region
      $region25: #{_lambda_.1} parent=5 // pred_check
        %p195 = pneg %p194
      $region26: #{_lambda_.1} parent=5 // pred_check_branch
        %197 = sbr.rel (%p195) target = $region28
      $region27: #{_lambda_.1} parent=5 // pred_region
        // Predicated region
        $region29: #{_lambda_.1} parent=27 // pred_check
          %p198 = pneg %p45
        $region30: #{_lambda_.1} parent=27 // pred_check_branch
          %200 = sbr.rel (%p198) target = $region32
        $region31: #{_lambda_.1} parent=27 // pred_region
          %s201 = smul.u32 8, %s19
          %p202 = scmp.lt.s32.totalorder %s18, 1
          %s203 = scalar_select %p202, %s18, 1
          %p204 = scmp.lt.s32.totalorder %s201, 31
          %s205 = scalar_select %p204, %s201, 31
          %s206 = smul.addr %s203, 32
          %s207 = sadd.s32 %s205, %s206
          %s208 = smul.addr %s207, 4
          %s209 = scalar_lea.vmem %s0, %s208
          %s210 = smul.u32 8, %s19
        $region32: #{_lambda_.1} parent=27 // pred_fallthru
          _
        // Predicated region
        $region33: #{_lambda_.1} parent=27 // pred_check
          %p211 = pneg %p73
        $region34: #{_lambda_.1} parent=27 // pred_check_branch
          %213 = sbr.rel (%p211) target = $region36
        $region35: #{_lambda_.1} parent=27 // pred_region
          %s214 = sand.u32 %s63, 1
          %s215 = sand.u32 %s63, 1
          %s216 = smul.addr %s215, 128
          %s217 = scalar_lea.vmem [#allocation2], %s216
          %s218 = smul.u32 8, %s19
          %s219 = smul.addr %s18, 64
          %s220 = sadd.s32 %s218, %s219
          %s221 = smul.addr %s220, 8
          %s222 = scalar_lea.vmem %s1, %s221
          // Predicated region
          $region37: #{_lambda_.1} parent=35 // pred_check
            _
          $region38: #{_lambda_.1} parent=35 // pred_check_branch
            %224 = sbr.rel (0) target = $region40
          $region39: #{_lambda_.1} parent=35 // pred_region
            // Predicated region
            $region41: #{_lambda_.1} parent=39 // pred_check
              _
            $region42: #{_lambda_.1} parent=39 // pred_check_branch
              %226 = sbr.rel (0) target = $region44
            $region43: #{_lambda_.1} parent=39 // pred_region
              loop: start=0, step=1, limit=1
              $region45: #{_lambda_.1} parent=43 // loop_pre_header
                _
              $region46: #{_lambda_.1} parent=43 // loop_header
                %s228 = sphi 0, %s232
                %p229 = scmp.ge.s32.totalorder %s228, 1
                %s233 = sphi %s222, %s222
                %s234 = sphi %s217, %s217
              $region47: #{_lambda_.1} parent=43 // loop_header_branch
                %231 = sbr.rel (%p229) target = $region51
              $region48: #{_lambda_.1} parent=43 // loop_body
                %v235 = vld [vmem:[%s233] sm:$0xff]
                %236 = vst [vmem:[%s234] sm:$0xff] %v235
                %v237 = vld [vmem:[%s233 + $0x8] sm:$0xff]
                %238 = vst [vmem:[%s234 + $0x8] sm:$0xff] %v237
                %v239 = vld [vmem:[%s233 + $0x10] sm:$0xff]
                %240 = vst [vmem:[%s234 + $0x10] sm:$0xff] %v239
                %v241 = vld [vmem:[%s233 + $0x18] sm:$0xff]
                %242 = vst [vmem:[%s234 + $0x18] sm:$0xff] %v241
                %v243 = vld [vmem:[%s233 + $0x20] sm:$0xff]
                %244 = vst [vmem:[%s234 + $0x20] sm:$0xff] %v243
                %v245 = vld [vmem:[%s233 + $0x28] sm:$0xff]
                %246 = vst [vmem:[%s234 + $0x28] sm:$0xff] %v245
                %v247 = vld [vmem:[%s233 + $0x30] sm:$0xff]
                %248 = vst [vmem:[%s234 + $0x30] sm:$0xff] %v247
                %v249 = vld [vmem:[%s233 + $0x38] sm:$0xff]
                %250 = vst [vmem:[%s234 + $0x38] sm:$0xff] %v249
                %v251 = vld [vmem:[%s233 + $0x100] sm:$0xff]
                %252 = vst [vmem:[%s234 + $0x40] sm:$0xff] %v251
                %v253 = vld [vmem:[%s233 + $0x108] sm:$0xff]
                %254 = vst [vmem:[%s234 + $0x48] sm:$0xff] %v253
                %v255 = vld [vmem:[%s233 + $0x110] sm:$0xff]
                %256 = vst [vmem:[%s234 + $0x50] sm:$0xff] %v255
                %v257 = vld [vmem:[%s233 + $0x118] sm:$0xff]
                %258 = vst [vmem:[%s234 + $0x58] sm:$0xff] %v257
                %v259 = vld [vmem:[%s233 + $0x120] sm:$0xff]
                %260 = vst [vmem:[%s234 + $0x60] sm:$0xff] %v259
                %v261 = vld [vmem:[%s233 + $0x128] sm:$0xff]
                %262 = vst [vmem:[%s234 + $0x68] sm:$0xff] %v261
                %v263 = vld [vmem:[%s233 + $0x130] sm:$0xff]
                %264 = vst [vmem:[%s234 + $0x70] sm:$0xff] %v263
                %v265 = vld [vmem:[%s233 + $0x138] sm:$0xff]
                %266 = vst [vmem:[%s234 + $0x78] sm:$0xff] %v265
              $region49: #{_lambda_.1} parent=43 // loop_footer
                %s232 = sadd.s32 1, %s228
              $region50: #{_lambda_.1} parent=43 // loop_footer_branch
                %227 = sbr.rel target = $region46
              $region51: #{_lambda_.1} parent=43 // loop_exit
                _
            $region44: #{_lambda_.1} parent=39 // pred_fallthru
              _
            // Predicated region
            $region52: #{_lambda_.1} parent=39 // pred_check
              _
            $region53: #{_lambda_.1} parent=39 // pred_check_branch
              %268 = sbr.rel target = $region55
            $region54: #{_lambda_.1} parent=39 // pred_region
              _
            $region55: #{_lambda_.1} parent=39 // pred_fallthru
              _
          $region40: #{_lambda_.1} parent=35 // pred_fallthru
            _
          %269 = vnop
        $region36: #{_lambda_.1} parent=27 // pred_fallthru
          _
      $region28: #{_lambda_.1} parent=5 // pred_fallthru
        _
      %p270 = scmp.le.s32.totalorder 1, %s11
      %p271 = scmp.lt.s32.totalorder %s11, 9
      %p272 = pnand %p270, %p271
      %p273 = pneg %p272
      // Predicated region
      $region56: #{_lambda_.1} parent=5 // pred_check
        _
      $region57: #{_lambda_.1} parent=5 // pred_check_branch
        %275 = sbr.rel (%p272) target = $region59
      $region58: #{_lambda_.1} parent=5 // pred_region
        %s276 = ssub.s32 %s11, 1
        %s277 = sand.u32 %s66, 1
        %s278 = sand.u32 %s66, 1
        %s279 = smul.addr %s278, 128
        %s280 = scalar_lea.vmem [#allocation2], %s279
        // Predicated region
        $region60: #{_lambda_.1} parent=58 // pred_check
          %p281 = pneg %p79
        $region61: #{_lambda_.1} parent=58 // pred_check_branch
          %283 = sbr.rel (%p281) target = $region63
        $region62: #{_lambda_.1} parent=58 // pred_region
          _
        $region63: #{_lambda_.1} parent=58 // pred_fallthru
          _
        %s284 = smul.u32 8, %s21
        %p285 = scmp.lt.s32.totalorder %s20, 1
        %s286 = scalar_select %p285, %s20, 1
        %p287 = scmp.lt.s32.totalorder %s284, 31
        %s288 = scalar_select %p287, %s284, 31
        %s289 = smul.addr %s286, 32
        %s290 = sadd.s32 %s288, %s289
        %s291 = smul.addr %s290, 4
        %s292 = scalar_lea.vmem %s0, %s291
        %p293 = pneg %p51
        %p294 = pneg %p48
        %s295 = sand.u32 %s66, 1
        %s296 = sand.u32 %s66, 1
        %s297 = smul.addr %s296, 128
        %s298 = scalar_lea.vmem [#allocation2], %s297
        %p299 = pneg %p79
        %p300 = pneg %p76
        %p301 = pneg %p100
        %p302 = pneg %p97
        %p303 = pneg %p121
        %p304 = pneg %p118
        %p305 = pneg %p142
        %p306 = pneg %p139
        %p307 = pneg %p170
        %p308 = pneg %p167
        %s309 = smul.u32 8, %s21
        %p310 = scmp.lt.s32.totalorder %s20, 1
        %s311 = scalar_select %p310, %s20, 1
        %p312 = scmp.lt.s32.totalorder %s309, 31
        %s313 = scalar_select %p312, %s309, 31
        %s314 = smul.addr %s311, 32
        %s315 = sadd.s32 %s313, %s314
        %s316 = smul.addr %s315, 4
        %s317 = scalar_lea.vmem %s5, %s316
        %s318 = smul.u32 8, %s21
        %p319 = scmp.lt.s32.totalorder %s20, 1
        %s320 = scalar_select %p319, %s20, 1
        %p321 = scmp.lt.s32.totalorder %s318, 31
        %s322 = scalar_select %p321, %s318, 31
        %s323 = smul.addr %s320, 32
        %s324 = sadd.s32 %s322, %s323
        %s325 = smul.addr %s324, 4
        %s326 = scalar_lea.vmem %s0, %s325
        %s327 = smul.u32 8, %s21
        %s328 = smul.u32 8, %s21
        %s329 = smul.u32 8, %s21
        %p330 = scmp.lt.s32.totalorder %s20, 1
        %s331 = scalar_select %p330, %s20, 1
        %p332 = scmp.lt.s32.totalorder %s329, 31
        %s333 = scalar_select %p332, %s329, 31
        %s334 = smul.addr %s331, 32
        %s335 = sadd.s32 %s333, %s334
        %s336 = smul.addr %s335, 4
        %s337 = scalar_lea.vmem %s5, %s336
        %s338 = smul.u32 8, %s21
        %v340 = vld [vmem:[%s326] sm:$0xff]
        %v341 = vld [vmem:[%s326 + $0x8] sm:$0xff]
        %v342 = vld [vmem:[%s326 + $0x10] sm:$0xff]
        %v343 = vld [vmem:[%s326 + $0x18] sm:$0xff]
        %v344 = vunpack.c.l.bf16 %v340
        %v345 = vunpack.c.h.bf16 %v340
        %v346 = vunpack.c.l.bf16 %v341
        %v347 = vunpack.c.h.bf16 %v341
        %v348 = vunpack.c.l.bf16 %v342
        %v349 = vunpack.c.h.bf16 %v342
        %v350 = vunpack.c.l.bf16 %v343
        %v351 = vunpack.c.h.bf16 %v343
        %v352 = vld [vmem:[%s3] sm:$0xff]
        %354 = vset.pattern.permute.xlu0 0
        %355 = vperm.xlu0 %354, %v352
        %v356 = vpop.permute.xlu0 %355
        %v358 = vadd.f32 %v344, %v356
        %v359 = vadd.f32 %v345, %v356
        %v360 = vadd.f32 %v346, %v356
        %v361 = vadd.f32 %v347, %v356
        %v362 = vadd.f32 %v348, %v356
        %v363 = vadd.f32 %v349, %v356
        %v364 = vadd.f32 %v350, %v356
        %v365 = vadd.f32 %v351, %v356
        %v366 = vmax.f32 %v358, 0.0
        %v367 = vmax.f32 %v359, 0.0
        %v368 = vmax.f32 %v360, 0.0
        %v369 = vmax.f32 %v361, 0.0
        %v370 = vmax.f32 %v362, 0.0
        %v371 = vmax.f32 %v363, 0.0
        %v372 = vmax.f32 %v364, 0.0
        %v373 = vmax.f32 %v365, 0.0
        %v374 = vld [vmem:[%s2] sm:$0xf]
        %v375 = vld [vmem:[%s280] sm:$0xff]
        %v376 = vld [vmem:[%s280 + $0x8] sm:$0xff]
        %v377 = vld [vmem:[%s280 + $0x10] sm:$0xff]
        %v378 = vld [vmem:[%s280 + $0x18] sm:$0xff]
        %v379 = vld [vmem:[%s280 + $0x20] sm:$0xff]
        %v380 = vld [vmem:[%s280 + $0x28] sm:$0xff]
        %v381 = vld [vmem:[%s280 + $0x30] sm:$0xff]
        %v382 = vld [vmem:[%s280 + $0x38] sm:$0xff]
        %v383 = vld [vmem:[%s280 + $0x40] sm:$0xff]
        %v384 = vld [vmem:[%s280 + $0x48] sm:$0xff]
        %v385 = vld [vmem:[%s280 + $0x50] sm:$0xff]
        %v386 = vld [vmem:[%s280 + $0x58] sm:$0xff]
        %v387 = vld [vmem:[%s280 + $0x60] sm:$0xff]
        %v388 = vld [vmem:[%s280 + $0x68] sm:$0xff]
        %v389 = vld [vmem:[%s280 + $0x70] sm:$0xff]
        %v390 = vld [vmem:[%s280 + $0x78] sm:$0xff]
        %v391 = vpack.c.bf16 %v383, %v375
        %v392 = vpack.c.bf16 %v384, %v376
        %v393 = vpack.c.bf16 %v385, %v377
        %v394 = vpack.c.bf16 %v386, %v378
        %v395 = vpack.c.bf16 %v387, %v379
        %v396 = vpack.c.bf16 %v388, %v380
        %v397 = vpack.c.bf16 %v389, %v381
        %v398 = vpack.c.bf16 %v390, %v382
        %v399 = vld [vmem:[%s4] sm:$0xff]
        %401 = vset.pattern.permute.xlu0 0
        %402 = vperm.xlu0 %401, %v399
        %v403 = vpop.permute.xlu0 %402
        %vm405 = vcmask 130048
        %v407 = vsel %vm405, %v374, 0
        %409 = vmatprep.subr.bf16.mxu0 %v392
        %410 = vmatpush1.bf16.msra.mxu0 %v391
        %411 = vmatprep.subr.bf16.mxu0 0
        %412 = vmatpush1.bf16.msra.mxu0 0
        %413 = vmatprep.subr.bf16.mxu0 0
        %414 = vmatpush1.bf16.msra.mxu0 0
        %415 = vmatprep.subr.bf16.mxu0 0
        %416 = vmatpush1.bf16.msra.mxu0 0
        %417 = vmatprep.subr.bf16.mxu0 0
        %418 = vmatpush1.bf16.msra.mxu0 0
        %419 = vmatprep.subr.bf16.mxu0 0
        %420 = vmatpush1.bf16.msra.mxu0 0
        %421 = vmatprep.subr.bf16.mxu0 0
        %422 = vmatpush1.bf16.msra.mxu0 0
        %423 = vmatprep.subr.bf16.mxu0 0
        %424 = vmatpush1.bf16.msra.mxu0 0
        %425 = vmatprep.subr.bf16.mxu0 0
        %426 = vmatpush1.bf16.msra.mxu0 0
        %427 = vmatprep.subr.bf16.mxu0 0
        %428 = vmatpush1.bf16.msra.mxu0 0
        %429 = vmatprep.subr.bf16.mxu0 0
        %430 = vmatpush1.bf16.msra.mxu0 0
        %431 = vmatprep.subr.bf16.mxu0 0
        %432 = vmatpush1.bf16.msra.mxu0 0
        %433 = vmatprep.subr.bf16.mxu0 0
        %434 = vmatpush1.bf16.msra.mxu0 0
        %435 = vmatprep.subr.bf16.mxu0 0
        %436 = vmatpush1.bf16.msra.mxu0 0
        %437 = vmatprep.subr.bf16.mxu0 0
        %438 = vmatpush1.bf16.msra.mxu0 0
        %439 = vmatprep.subr.bf16.mxu0 0
        %440 = vmatpush1.bf16.msra.mxu0 0
        %441 = vmatprep.mubr.bf16.mxu0 0
        %442 = vmatmul.mubr.bf16.gmra.mrb[0].mxu0 %v407
        %v443 = vpop.f32.mrb[0].mxu0
        %v444 = vadd.f32 %v403, %v443
        %v445 = vpop.f32.mrb[0].mxu0
        %v446 = vadd.f32 %v403, %v445
        %v447 = vpop.f32.mrb[0].mxu0
        %v448 = vpop.f32.mrb[0].mxu0
        %449 = vdwg.mxu0
        %450 = vmatprep.subr.bf16.mxu0 %v394
        %451 = vmatpush1.bf16.msra.mxu0 %v393
        %452 = vmatprep.subr.bf16.mxu0 0
        %453 = vmatpush1.bf16.msra.mxu0 0
        %454 = vmatprep.subr.bf16.mxu0 0
        %455 = vmatpush1.bf16.msra.mxu0 0
        %456 = vmatprep.subr.bf16.mxu0 0
        %457 = vmatpush1.bf16.msra.mxu0 0
        %458 = vmatprep.subr.bf16.mxu0 0
        %459 = vmatpush1.bf16.msra.mxu0 0
        %460 = vmatprep.subr.bf16.mxu0 0
        %461 = vmatpush1.bf16.msra.mxu0 0
        %462 = vmatprep.subr.bf16.mxu0 0
        %463 = vmatpush1.bf16.msra.mxu0 0
        %464 = vmatprep.subr.bf16.mxu0 0
        %465 = vmatpush1.bf16.msra.mxu0 0
        %466 = vmatprep.subr.bf16.mxu0 0
        %467 = vmatpush1.bf16.msra.mxu0 0
        %468 = vmatprep.subr.bf16.mxu0 0
        %469 = vmatpush1.bf16.msra.mxu0 0
        %470 = vmatprep.subr.bf16.mxu0 0
        %471 = vmatpush1.bf16.msra.mxu0 0
        %472 = vmatprep.subr.bf16.mxu0 0
        %473 = vmatpush1.bf16.msra.mxu0 0
        %474 = vmatprep.subr.bf16.mxu0 0
        %475 = vmatpush1.bf16.msra.mxu0 0
        %476 = vmatprep.subr.bf16.mxu0 0
        %477 = vmatpush1.bf16.msra.mxu0 0
        %478 = vmatprep.subr.bf16.mxu0 0
        %479 = vmatpush1.bf16.msra.mxu0 0
        %480 = vmatprep.subr.bf16.mxu0 0
        %481 = vmatpush1.bf16.msra.mxu0 0
        %482 = vmatprep.mubr.bf16.mxu0 0
        %483 = vmatmul.mubr.bf16.gmra.mrb[0].mxu0 %v407
        %v484 = vpop.f32.mrb[0].mxu0
        %v485 = vadd.f32 %v403, %v484
        %v486 = vpop.f32.mrb[0].mxu0
        %v487 = vadd.f32 %v403, %v486
        %v488 = vpop.f32.mrb[0].mxu0
        %v489 = vpop.f32.mrb[0].mxu0
        %490 = vdwg.mxu0
        %491 = vmatprep.subr.bf16.mxu0 %v396
        %492 = vmatpush1.bf16.msra.mxu0 %v395
        %493 = vmatprep.subr.bf16.mxu0 0
        %494 = vmatpush1.bf16.msra.mxu0 0
        %495 = vmatprep.subr.bf16.mxu0 0
        %496 = vmatpush1.bf16.msra.mxu0 0
        %497 = vmatprep.subr.bf16.mxu0 0
        %498 = vmatpush1.bf16.msra.mxu0 0
        %499 = vmatprep.subr.bf16.mxu0 0
        %500 = vmatpush1.bf16.msra.mxu0 0
        %501 = vmatprep.subr.bf16.mxu0 0
        %502 = vmatpush1.bf16.msra.mxu0 0
        %503 = vmatprep.subr.bf16.mxu0 0
        %504 = vmatpush1.bf16.msra.mxu0 0
        %505 = vmatprep.subr.bf16.mxu0 0
        %506 = vmatpush1.bf16.msra.mxu0 0
        %507 = vmatprep.subr.bf16.mxu0 0
        %508 = vmatpush1.bf16.msra.mxu0 0
        %509 = vmatprep.subr.bf16.mxu0 0
        %510 = vmatpush1.bf16.msra.mxu0 0
        %511 = vmatprep.subr.bf16.mxu0 0
        %512 = vmatpush1.bf16.msra.mxu0 0
        %513 = vmatprep.subr.bf16.mxu0 0
        %514 = vmatpush1.bf16.msra.mxu0 0
        %515 = vmatprep.subr.bf16.mxu0 0
        %516 = vmatpush1.bf16.msra.mxu0 0
        %517 = vmatprep.subr.bf16.mxu0 0
        %518 = vmatpush1.bf16.msra.mxu0 0
        %519 = vmatprep.subr.bf16.mxu0 0
        %520 = vmatpush1.bf16.msra.mxu0 0
        %521 = vmatprep.subr.bf16.mxu0 0
        %522 = vmatpush1.bf16.msra.mxu0 0
        %523 = vmatprep.mubr.bf16.mxu0 0
        %524 = vmatmul.mubr.bf16.gmra.mrb[0].mxu0 %v407
        %v525 = vpop.f32.mrb[0].mxu0
        %v526 = vadd.f32 %v403, %v525
        %v527 = vpop.f32.mrb[0].mxu0
        %v528 = vadd.f32 %v403, %v527
        %v529 = vpop.f32.mrb[0].mxu0
        %v530 = vpop.f32.mrb[0].mxu0
        %531 = vdwg.mxu0
        %532 = vmatprep.subr.bf16.mxu0 %v398
        %533 = vmatpush1.bf16.msra.mxu0 %v397
        %534 = vmatprep.subr.bf16.mxu0 0
        %535 = vmatpush1.bf16.msra.mxu0 0
        %536 = vmatprep.subr.bf16.mxu0 0
        %537 = vmatpush1.bf16.msra.mxu0 0
        %538 = vmatprep.subr.bf16.mxu0 0
        %539 = vmatpush1.bf16.msra.mxu0 0
        %540 = vmatprep.subr.bf16.mxu0 0
        %541 = vmatpush1.bf16.msra.mxu0 0
        %542 = vmatprep.subr.bf16.mxu0 0
        %543 = vmatpush1.bf16.msra.mxu0 0
        %544 = vmatprep.subr.bf16.mxu0 0
        %545 = vmatpush1.bf16.msra.mxu0 0
        %546 = vmatprep.subr.bf16.mxu0 0
        %547 = vmatpush1.bf16.msra.mxu0 0
        %548 = vmatprep.subr.bf16.mxu0 0
        %549 = vmatpush1.bf16.msra.mxu0 0
        %550 = vmatprep.subr.bf16.mxu0 0
        %551 = vmatpush1.bf16.msra.mxu0 0
        %552 = vmatprep.subr.bf16.mxu0 0
        %553 = vmatpush1.bf16.msra.mxu0 0
        %554 = vmatprep.subr.bf16.mxu0 0
        %555 = vmatpush1.bf16.msra.mxu0 0
        %556 = vmatprep.subr.bf16.mxu0 0
        %557 = vmatpush1.bf16.msra.mxu0 0
        %558 = vmatprep.subr.bf16.mxu0 0
        %559 = vmatpush1.bf16.msra.mxu0 0
        %560 = vmatprep.subr.bf16.mxu0 0
        %561 = vmatpush1.bf16.msra.mxu0 0
        %562 = vmatprep.subr.bf16.mxu0 0
        %563 = vmatpush1.bf16.msra.mxu0 0
        %564 = vmatprep.mubr.bf16.mxu0 0
        %565 = vmatmul.mubr.bf16.gmra.mrb[0].mxu0 %v407
        %v566 = vpop.f32.mrb[0].mxu0
        %v567 = vadd.f32 %v403, %v566
        %v568 = vpop.f32.mrb[0].mxu0
        %v569 = vadd.f32 %v403, %v568
        %v570 = vpop.f32.mrb[0].mxu0
        %v571 = vpop.f32.mrb[0].mxu0
        %572 = vdwg.mxu0
        %v573 = vmax.f32 %v444, 0.0
        %v574 = vmax.f32 %v446, 0.0
        %v575 = vmax.f32 %v485, 0.0
        %v576 = vmax.f32 %v487, 0.0
        %v577 = vmax.f32 %v526, 0.0
        %v578 = vmax.f32 %v528, 0.0
        %v579 = vmax.f32 %v567, 0.0
        %v580 = vmax.f32 %v569, 0.0
        %v581 = vadd.f32 %v366, %v573
        %v582 = vadd.f32 %v367, %v574
        %v583 = vadd.f32 %v368, %v575
        %v584 = vadd.f32 %v369, %v576
        %v585 = vadd.f32 %v370, %v577
        %v586 = vadd.f32 %v371, %v578
        %v587 = vadd.f32 %v372, %v579
        %v588 = vadd.f32 %v373, %v580
        %v589 = vpack.c.bf16 %v581, %v581
        %v590 = vpack.c.bf16 %v582, %v582
        %v591 = vpack.c.bf16 %v583, %v583
        %v592 = vpack.c.bf16 %v584, %v584
        %v593 = vpack.c.bf16 %v585, %v585
        %v594 = vpack.c.bf16 %v586, %v586
        %v595 = vpack.c.bf16 %v587, %v587
        %v596 = vpack.c.bf16 %v588, %v588
        %v605 = vunpack.c.l.b16 %v589
        %v606 = vunpack.c.l.b16 %v590
        %v607 = vunpack.c.l.b16 %v591
        %v608 = vunpack.c.l.b16 %v592
        %v609 = vunpack.c.l.b16 %v593
        %v610 = vunpack.c.l.b16 %v594
        %v611 = vunpack.c.l.b16 %v595
        %v612 = vunpack.c.l.b16 %v596
        %v613 = vpack.c.b16 %v606, %v605
        %v614 = vpack.c.b16 %v608, %v607
        %v615 = vpack.c.b16 %v610, %v609
        %v616 = vpack.c.b16 %v612, %v611
        %621 = vst [vmem:[%s337] sm:$0xff] %v613
        %622 = vst [vmem:[%s337 + $0x8] sm:$0xff] %v614
        %623 = vst [vmem:[%s337 + $0x10] sm:$0xff] %v615
        %624 = vst [vmem:[%s337 + $0x18] sm:$0xff] %v616
        %s625 = smul.u32 8, %s21
        %p626 = scmp.lt.s32.totalorder %s20, 1
        %s627 = scalar_select %p626, %s20, 1
        %p628 = scmp.lt.s32.totalorder %s625, 31
        %s629 = scalar_select %p628, %s625, 31
        %s630 = smul.addr %s627, 32
        %s631 = sadd.s32 %s629, %s630
        %s632 = smul.addr %s631, 4
        %s633 = scalar_lea.vmem %s5, %s632
        // Predicated region
        $region64: #{_lambda_.1} parent=58 // pred_check
          %p634 = pneg %p167
        $region65: #{_lambda_.1} parent=58 // pred_check_branch
          %636 = sbr.rel (%p634) target = $region67
        $region66: #{_lambda_.1} parent=58 // pred_region
          %s637 = smul.u32 8, %s21
        $region67: #{_lambda_.1} parent=58 // pred_fallthru
          _
      $region59: #{_lambda_.1} parent=5 // pred_fallthru
        _
      %p638 = scmp.le.s32.totalorder 2, %s11
      // Predicated region
      $region68: #{_lambda_.1} parent=5 // pred_check
        %p639 = pneg %p638
      $region69: #{_lambda_.1} parent=5 // pred_check_branch
        %641 = sbr.rel (%p639) target = $region71
      $region70: #{_lambda_.1} parent=5 // pred_region
        %s642 = ssub.s32 %s11, 2
        // Predicated region
        $region72: #{_lambda_.1} parent=70 // pred_check
          %p643 = pneg %p173
        $region73: #{_lambda_.1} parent=70 // pred_check_branch
          %645 = sbr.rel (%p643) target = $region75
        $region74: #{_lambda_.1} parent=70 // pred_region
          %s646 = smul.u32 8, %s23
          %p647 = scmp.lt.s32.totalorder %s22, 1
          %s648 = scalar_select %p647, %s22, 1
          %p649 = scmp.lt.s32.totalorder %s646, 31
          %s650 = scalar_select %p649, %s646, 31
          %s651 = smul.addr %s648, 32
          %s652 = sadd.s32 %s650, %s651
          %s653 = smul.addr %s652, 4
          %s654 = scalar_lea.vmem %s5, %s653
        $region75: #{_lambda_.1} parent=70 // pred_fallthru
          _
      $region71: #{_lambda_.1} parent=5 // pred_fallthru
        _
    $region6: #{_lambda_.1} parent=1 // loop_footer
      %s15 = sadd.s32 1, %s11
    $region7: #{_lambda_.1} parent=1 // loop_footer_branch
      %10 = sbr.rel target = $region3
    $region8: #{_lambda_.1} parent=1 // loop_exit
      _

</llo_original>
